<compile_context>
chip_gen: v7x
topology: tpu7x:2x2x1
jax: 0.10.0
libtpu: 0.0.40
codegen_flags: <defaults>
</compile_context>

<pallas_src>
import math
import functools

import jax
import jax.numpy as jnp
from jax.experimental import pallas as pl
from jax.experimental.pallas import tpu as pltpu


# ----------------------------------------------------------------------------
# Buffer setup (deterministic, mirrors nn.Module.__init__)
# ----------------------------------------------------------------------------
def make_positional_encoding_table(max_len: int, embed_size: int,
                                   dtype=jnp.float32) -> jax.Array:
    """pe[pos, 2i]   = sin(pos * exp(2i * -ln(10000)/embed))
       pe[pos, 2i+1] = cos(pos * exp(2i * -ln(10000)/embed))"""
    position = jnp.arange(0.0, max_len, dtype=jnp.float32)[:, None]          # (L, 1)
    div_term = jnp.exp(jnp.arange(0.0, embed_size, 2.0, dtype=jnp.float32)
                       * (-math.log(10000.0) / embed_size))                  # (E/2,)
    angles = position * div_term                                             # (L, E/2)
    pe = jnp.zeros((max_len, embed_size), jnp.float32)
    pe = pe.at[:, 0::2].set(jnp.sin(angles))
    pe = pe.at[:, 1::2].set(jnp.cos(angles))
    return pe.astype(dtype)


# ----------------------------------------------------------------------------
# Pallas kernel: out_tile = dropout(x_tile + pe_tile)
# ----------------------------------------------------------------------------
def _pe_dropout_kernel(seed_ref, x_ref, pe_ref, o_ref, *,
                       p: float, training: bool,
                       seq_len: int, embed: int, tile_b: int, tile_s: int):
    # x_ref : (tile_b, tile_s, E) VMEM tile
    # pe_ref: (tile_s, E)         VMEM tile, broadcast over batch
    y = x_ref[...] + pe_ref[...]

    if training and p > 0.0:
        # Counter-based PRNG: hash of (seed, global element index).  Pure jnp
        # integer ops -> lowers on TPU Mosaic and in interpret mode, and the
        # mask is independent of the chosen tiling.
        b0 = pl.program_id(1) * tile_b
        s0 = pl.program_id(0) * tile_s
        shape = y.shape
        bi = jax.lax.broadcasted_iota(jnp.int32, shape, 0) + b0
        si = jax.lax.broadcasted_iota(jnp.int32, shape, 1) + s0
        ei = jax.lax.broadcasted_iota(jnp.int32, shape, 2)
        ctr = ((bi * seq_len + si) * embed + ei).astype(jnp.uint32)

        h = ctr + jnp.uint32(0x9E3779B9) * seed_ref[0].astype(jnp.uint32)
        # 32-bit mix (xxhash/murmur-style finalizer)
        h = h ^ (h >> 16)
        h = h * jnp.uint32(0x7FEB352D)
        h = h ^ (h >> 15)
        h = h * jnp.uint32(0x846CA68B)
        h = h ^ (h >> 16)

        # Keep with prob (1 - p): compare 31 random bits vs. integer threshold
        # (no uniform-float temporary / scaling ops).
        bits31 = (h & jnp.uint32(0x7FFFFFFF)).astype(jnp.int32)
        thresh = min(int(round(p * (1 << 31))), (1 << 31) - 1)
        keep = bits31 >= jnp.int32(thresh)
        y = jnp.where(keep, y * (1.0 / (1.0 - p)), jnp.zeros_like(y))

    o_ref[...] = y.astype(o_ref.dtype)


# ----------------------------------------------------------------------------
# Wrapper
# ----------------------------------------------------------------------------
def _choose_tiles(B: int, S: int, E: int, itemsize: int):
    # Target ~1024 rows per block, capped so one x tile is <= 2 MiB; with
    # double-buffered x/out/pe tiles the total stays well under the default
    # 32 MiB scoped VMEM (v7x has 64 MiB physical per TensorCore).
    max_tile_bytes = 2 * 1024 * 1024
    rows_cap = max(1, max_tile_bytes // max(1, E * itemsize))
    target_rows = max(1, min(1024, rows_cap))
    if S >= 8:
        tile_s = min((S // 8) * 8, max(8, (target_rows // 8) * 8))
    else:
        tile_s = S  # S < 8: pe is pre-sliced so full-dim blocks are legal
    tile_b = max(1, min(B, target_rows // max(1, tile_s)))
    return tile_b, tile_s


def positional_encoding_forward(x: jax.Array,
                                pe: jax.Array,
                                *,
                                p: float = 0.1,
                                training: bool = False,
                                seed: int = 0) -> jax.Array:
    """x: (batch, seq, embed); pe: (max_len, embed).  Returns dropout(x + pe[:seq])."""
    B, S, E = x.shape
    max_len, pe_e = pe.shape
    assert pe_e == E and max_len >= S
    assert 0.0 <= p <= 1.0

    if pe.dtype != x.dtype:
        pe = pe.astype(x.dtype)           # keep bf16 activations bf16 end-to-end

    if training and p >= 1.0:
        # torch.nn.Dropout(p=1.0) zeroes the output; avoid 1/(1-p) = inf.
        return jnp.zeros_like(x)

    tile_b, tile_s = _choose_tiles(B, S, E, x.dtype.itemsize)
    if S < 8:
        # Full-dim blocks require the pe operand to have exactly S rows.
        pe = jax.lax.slice(pe, (0, 0), (S, E))

    n_s = pl.cdiv(S, tile_s)
    n_b = pl.cdiv(B, tile_b)
    seed_arr = jnp.array([seed], dtype=jnp.int32)

    kernel = functools.partial(
        _pe_dropout_kernel, p=float(p), training=bool(training),
        seq_len=S, embed=E, tile_b=tile_b, tile_s=tile_s)

    itemsize = x.dtype.itemsize
    cost = pl.CostEstimate(
        flops=2 * B * S * E,
        transcendentals=0,
        bytes_accessed=(2 * B * S * E + S * E) * itemsize,
    )

    # Grid: seq tiles vary slowest -> pe block index (i_s, 0) is unchanged
    # across the inner batch axis, so the pe tile stays resident in VMEM.
    return pl.pallas_call(
        kernel,
        out_shape=jax.ShapeDtypeStruct((B, S, E), x.dtype),
        grid_spec=pltpu.PrefetchScalarGridSpec(
            num_scalar_prefetch=1,
            grid=(n_s, n_b),
            in_specs=[
                pl.BlockSpec((tile_b, tile_s, E), lambda i_s, i_b, seed: (i_b, i_s, 0)),
                pl.BlockSpec((tile_s, E),         lambda i_s, i_b, seed: (i_s, 0)),
            ],
            out_specs=pl.BlockSpec((tile_b, tile_s, E),
                                   lambda i_s, i_b, seed: (i_b, i_s, 0)),
        ),
        compiler_params=pltpu.CompilerParams(
            dimension_semantics=("parallel", "parallel")),
        cost_estimate=cost,
    )(seed_arr, x, pe)


# ----------------------------------------------------------------------------
# Demo / correctness check
# ----------------------------------------------------------------------------
if __name__ == "__main__":
    embed_size = 32
    max_len = 64
    batch, seq = 2, 8
    dropout_p = 0.1

    key = jax.random.PRNGKey(0)
    x = jax.random.normal(key, (batch, seq, embed_size), dtype=jnp.float32)
    pe = make_positional_encoding_table(max_len, embed_size, dtype=jnp.float32)

    # Eval mode: dropout is identity -> must match the reference exactly.
    out_eval = positional_encoding_forward(x, pe, p=dropout_p, training=False)
    out_eval = jax.block_until_ready(out_eval)
    ref = x + pe[:seq][None, :, :]
    assert out_eval.shape == x.shape and out_eval.dtype == x.dtype
    assert jnp.allclose(out_eval, ref, atol=1e-6, rtol=1e-6), "eval mismatch vs reference"

    # Training mode: every element is either 0 (dropped) or ref / (1 - p) (kept).
    out_train = positional_encoding_forward(x, pe, p=dropout_p, training=True, seed=1234)
    out_train = jax.block_until_ready(out_train)
    assert out_train.shape == x.shape and out_train.dtype == x.dtype
    kept = ref * (1.0 / (1.0 - dropout_p))
    ok = jnp.isclose(out_train, 0.0, atol=1e-6) | jnp.isclose(out_train, kept,
                                                              atol=1e-5, rtol=1e-5)
    assert bool(jnp.all(ok)), "training-mode output is not {0, x/(1-p)}-structured"

    print("KERNEL_OK")
</pallas_src>

<mosaic_0001>
module attributes {stable_mosaic.version = 11 : i64} {
  func.func @_pe_dropout_kernel(%arg0: i32, %arg1: i32, %arg2: memref<1xi32, #tpu.memory_space<smem>>, %arg3: memref<2x8x32xf32, #tpu.memory_space<vmem>>, %arg4: memref<8x32xf32, #tpu.memory_space<vmem>>, %arg5: memref<2x8x32xf32, #tpu.memory_space<vmem>>) attributes {dimension_semantics = [#tpu.dimension_semantics<parallel>, #tpu.dimension_semantics<parallel>], iteration_bounds = array<i64: 1, 1>, scalar_prefetch = 1 : i64, scratch_operands = 0 : i64, tpu.core_type = #tpu.core_type<tc>, window_params = [{transform_indices = @transform_0, window_bounds = array<i64: 2, 8, 32>}, {transform_indices = @transform_1, window_bounds = array<i64: 8, 32>}, {transform_indices = @transform_2, window_bounds = array<i64: 2, 8, 32>}]} {
    %c0 = arith.constant 0 : index
    %c0_0 = arith.constant 0 : index
    %c0_1 = arith.constant 0 : index
    %0 = vector.load %arg3[%c0, %c0_0, %c0_1] : memref<2x8x32xf32, #tpu.memory_space<vmem>>, vector<2x8x32xf32>
    %c0_2 = arith.constant 0 : index
    %c0_3 = arith.constant 0 : index
    %1 = vector.load %arg4[%c0_2, %c0_3] : memref<8x32xf32, #tpu.memory_space<vmem>>, vector<8x32xf32>
    %2 = vector.shape_cast %1 : vector<8x32xf32> to vector<1x8x32xf32>
    %3 = vector.broadcast %2 : vector<1x8x32xf32> to vector<2x8x32xf32>
    %4 = arith.addf %0, %3 : vector<2x8x32xf32>
    %c0_4 = arith.constant 0 : index
    %c0_5 = arith.constant 0 : index
    %c0_6 = arith.constant 0 : index
    %5 = vector.load %arg5[%c0_4, %c0_5, %c0_6] : memref<2x8x32xf32, #tpu.memory_space<vmem>>, vector<2x8x32xf32>
    tpu.vector_store %arg5[%c0_4, %c0_5, %c0_6], %4 {strides = array<i32>} : memref<2x8x32xf32, #tpu.memory_space<vmem>>, vector<2x8x32xf32>,
    return
  }
  func.func @transform_0(%arg0: i32, %arg1: i32, %arg2: memref<1xi32, #tpu.memory_space<smem>>) -> (i32, i32, i32) {
    %c0_i32 = arith.constant 0 : i32
    %c0_i32_0 = arith.constant 0 : i32
    return %arg1, %arg0, %c0_i32 : i32, i32, i32
  }
  func.func @transform_1(%arg0: i32, %arg1: i32, %arg2: memref<1xi32, #tpu.memory_space<smem>>) -> (i32, i32) {
    %c0_i32 = arith.constant 0 : i32
    %c0_i32_0 = arith.constant 0 : i32
    return %arg0, %c0_i32 : i32, i32
  }
  func.func @transform_2(%arg0: i32, %arg1: i32, %arg2: memref<1xi32, #tpu.memory_space<smem>>) -> (i32, i32, i32) {
    %c0_i32 = arith.constant 0 : i32
    %c0_i32_0 = arith.constant 0 : i32
    return %arg1, %arg0, %c0_i32 : i32, i32, i32
  }
}

</mosaic_0001>

<llo_original>
// kernel: tpu_custom_call.1
$region0: #{tpu_custom_call.1}
  #allocation0 [shape = 'u32[]', space=smem, size = 0x4, offset = 0x4, fixed_abs, tag = 'smem constant byte address 0x4 - core index']
  #allocation1 [shape = 'u32[144,128]{1,0:T(1,128)}', space=vmem, size = 0x12000, scoped, tag = 'internal scratch']
  #allocation2 [shape = 's32[1]{0}', space=sflag, size = 0x4, scoped, tag = 'scoped memory for tpu_custom_call.1']
  #allocation3 [shape = 's32[1]{0:T(128)S(6)}', space=smem, size = 0x200, scoped, tag = 'prefetched SMEM operand 0']
  %s0 = inlined_call_operand.<no memory space> [shape: s32[1], index: 0, kind: input, shape index: {}]
  %s1 = inlined_call_operand.vmem [shape: f32[2,8,32], index: 1, kind: input, shape index: {}]
  %s2 = inlined_call_operand.vmem [shape: f32[64,32], index: 2, kind: input, shape index: {}]
  %s3 = inlined_call_operand.hbm [shape: f32[2,8,32], index: 3, kind: output, shape index: {}]
  %s4 = sld [smem:[#allocation0]]
  $region18: #{tpu_custom_call.1} parent=0
    _
  %s6 = ssub.s32 1, %s4
  %s7 = scalar_select 0, %s6, %s4
  %8 = sst [smem:[#allocation3]] %s0
  $region1: #{tpu_custom_call.1} parent=0
    #allocation4 [shape = 'u8[8192]{0}', space=vmem, size = 0x2000, scoped, tag = 'output window, operand 0, single buffered']
    #allocation5 [shape = 's32[1]{0}', space=sflag, size = 0x4, scoped, tag = 'scoped memory for tpu_custom_call.1']
    %9 = vsyncpa [#allocation5], 0
    // Predicated region
    $region2: #{tpu_custom_call.1} parent=1 // pred_check
      _
    $region3: #{tpu_custom_call.1} parent=1 // pred_check_branch
      %11 = sbr.rel (0) target = $region5
    $region4: #{tpu_custom_call.1} parent=1 // pred_region
      _
    $region5: #{tpu_custom_call.1} parent=1 // pred_fallthru
      _
    // Predicated region
    $region6: #{tpu_custom_call.1} parent=1 // pred_check
      _
    $region7: #{tpu_custom_call.1} parent=1 // pred_check_branch
      %13 = sbr.rel (0) target = $region9
    $region8: #{tpu_custom_call.1} parent=1 // pred_region
      _
    $region9: #{tpu_custom_call.1} parent=1 // pred_fallthru
      _
    %v14 = vld [vmem:[%s1] sm:$0xff]
    %v15 = vld [vmem:[%s1 + $0x8] sm:$0xff]
    %v16 = vld [vmem:[%s2] sm:$0xff]
    %v17 = vadd.f32 %v14, %v16
    %v18 = vadd.f32 %v15, %v16
    %vm19 = vcmask 261120
    %20 = vst.msk [vmem:[#allocation4] sm:$0xff] %vm19, %v17
    %21 = vst.msk [vmem:[#allocation4 + $0x8] sm:$0xff] %vm19, %v18
    // Predicated region
    $region10: #{tpu_custom_call.1} parent=1 // pred_check
      _
    $region11: #{tpu_custom_call.1} parent=1 // pred_check_branch
      %23 = sbr.rel (0) target = $region13
    $region12: #{tpu_custom_call.1} parent=1 // pred_region
      %s25 = ssub.s32 256, 256
      %26 = vsyncadd [#allocation5], %s25
      %s27 = sshll.u32 [#allocation4], 4
      %s28 = int_to_ptr.vmem [resolvable:$true] %s27
      %33 = dma.vmem_to_hbm [thread:$0]  %s28, 256, %s3, [#allocation5], 128, 128, 8
    $region13: #{tpu_custom_call.1} parent=1 // pred_fallthru
      _
    // Predicated region
    $region14: #{tpu_custom_call.1} parent=1 // pred_check
      _
    $region15: #{tpu_custom_call.1} parent=1 // pred_check_branch
      %35 = sbr.rel (0) target = $region17
    $region16: #{tpu_custom_call.1} parent=1 // pred_region
      %36 = dma.done [#allocation5], 256
    $region17: #{tpu_custom_call.1} parent=1 // pred_fallthru
      _
    %37 = vsyncpa [#allocation5], 1

</llo_original>
